<compile_context>
chip_gen: v7x
topology: tpu7x:2x2x1
jax: 0.10.0
libtpu: 0.0.40
codegen_flags: <defaults>
</compile_context>

<pallas_src>
import functools

import jax
import jax.numpy as jnp
from jax.experimental import pallas as pl
from jax.experimental.pallas import tpu as pltpu


def lstm_fc_kernel(x_ref, wih_ref, whh_ref, b_ref, fcw_ref, fcb_ref, o_ref, xw_ref):
    """Fused LSTM unroll + final Linear. All operands are full-array VMEM blocks.

    x_ref   : (T*B, Ip)  f32   time-major flattened input, K zero-padded to Ip
    wih_ref : (Ip, 4H)   f32   input->gate weights, columns [i | f | g | o]
    whh_ref : (H, 4H)    bf16  hidden->gate weights, same column order
    b_ref   : (1, 4H)    f32   b_ih + b_hh
    fcw_ref : (H, Op)    bf16  final Linear weight (lane-padded to Op)
    fcb_ref : (1, Op)    f32   final Linear bias   (lane-padded to Op)
    o_ref   : (B, O)     f32   model output
    xw_ref  : (T*B, 4H)  f32   VMEM scratch for the hoisted input projection
    """
    TB = x_ref.shape[0]
    H = whh_ref.shape[0]
    B = o_ref.shape[0]
    T = TB // B

    # Hoisted input projection: ONE MXU call for all timesteps, bias folded in.
    # Parked in VMEM scratch so it is not a live vreg value across the recurrence.
    xw_ref[...] = (
        jnp.dot(x_ref[...], wih_ref[...], preferred_element_type=jnp.float32)
        + b_ref[...]
    )

    h = jnp.zeros((B, H), jnp.float32)
    c = jnp.zeros((B, H), jnp.float32)

    # Serial recurrence: only h @ W_hh remains per step. T=8 is small and static so
    # a full unroll with static slice offsets is fine.
    for t in range(T):
        gates = xw_ref[t * B:(t + 1) * B, :] + jnp.dot(
            h.astype(jnp.bfloat16), whh_ref[...],
            preferred_element_type=jnp.float32,
        )  # (B, 4H) f32, columns [i | f | g | o], each H lanes wide

        # EUP issue order: g first (needed for c), then the contiguous 128-lane
        # [i|f] block, then o so it drains while the c update runs; tanh(c) last.
        g_g = jnp.tanh(gates[:, 2 * H:3 * H])
        if_s = jax.nn.sigmoid(gates[:, 0:2 * H])
        o_g = jax.nn.sigmoid(gates[:, 3 * H:4 * H])
        i_g = if_s[:, 0:H]
        f_g = if_s[:, H:2 * H]

        c = f_g * c + i_g * g_g
        h = o_g * jnp.tanh(c)

    # Final Linear on the last hidden state (== out[:, -1, :] of the torch module).
    # fcw is lane-padded so the MXU sees a 128-wide N; only real columns are stored.
    fc = (
        jnp.dot(h.astype(jnp.bfloat16), fcw_ref[...],
                preferred_element_type=jnp.float32)
        + fcb_ref[...]
    )
    o_ref[...] = fc[:, : o_ref.shape[1]]


def init_params(key, input_size=2, hidden_size=64, output_size=2):
    """Raw params in PyTorch nn.LSTM / nn.Linear layout (gate row order [i,f,g,o])."""
    k = jax.random.split(key, 6)
    H = hidden_size
    return {
        "w_ih": jax.random.normal(k[0], (4 * H, input_size), jnp.float32) * 0.1,
        "w_hh": jax.random.normal(k[1], (4 * H, H), jnp.float32) * 0.1,
        "b_ih": jax.random.normal(k[2], (4 * H,), jnp.float32) * 0.1,
        "b_hh": jax.random.normal(k[3], (4 * H,), jnp.float32) * 0.1,
        "fc_w": jax.random.normal(k[4], (output_size, H), jnp.float32) * 0.1,
        "fc_b": jax.random.normal(k[5], (output_size,), jnp.float32) * 0.1,
    }


def pack_params(raw, input_size=2, hidden_size=64, output_size=2, Ip=128, Op=128):
    """One-time packing into the kernel layout (done outside the hot path).

    Gates keep PyTorch's native [i, f, g, o] order; each gate is H=64 lanes so
    4H = 256 is lane-aligned with zero hidden-dim padding. Only the tiny input (K)
    and FC output (N) dims are zero-padded for clean MXU shapes.
    """
    H = hidden_size
    wih = jnp.zeros((Ip, 4 * H), jnp.float32)
    wih = wih.at[:input_size, :].set(jnp.transpose(raw["w_ih"]))
    whh = jnp.transpose(raw["w_hh"]).astype(jnp.bfloat16)                 # (H, 4H)
    b = (raw["b_ih"] + raw["b_hh"]).reshape(1, 4 * H).astype(jnp.float32)
    fcw = jnp.zeros((H, Op), jnp.bfloat16)
    fcw = fcw.at[:, :output_size].set(jnp.transpose(raw["fc_w"]).astype(jnp.bfloat16))
    fcb = jnp.zeros((1, Op), jnp.float32)
    fcb = fcb.at[0, :output_size].set(raw["fc_b"])
    return {"wih": wih, "whh": whh, "b": b, "fcw": fcw, "fcb": fcb}


@functools.partial(jax.jit, static_argnames=("output_size",))
def lstm_model_forward(x, params, output_size=2):
    """x: (B, T, input_size) float32, batch_first like the PyTorch module."""
    B, T, I = x.shape
    Ip = params["wih"].shape[0]
    H = params["whh"].shape[0]

    # Single fused relayout under jit: batch-major (B,T,I) -> time-major (T*B, Ip).
    x_flat = jnp.pad(
        jnp.swapaxes(x, 0, 1).reshape(T * B, I), ((0, 0), (0, Ip - I))
    ).astype(jnp.float32)

    vmem = pl.BlockSpec(memory_space=pltpu.MemorySpace.VMEM)
    return pl.pallas_call(
        lstm_fc_kernel,
        out_shape=jax.ShapeDtypeStruct((B, output_size), jnp.float32),
        in_specs=[vmem] * 6,
        out_specs=vmem,
        scratch_shapes=[pltpu.VMEM((T * B, 4 * H), jnp.float32)],
    )(x_flat, params["wih"], params["whh"], params["b"], params["fcw"], params["fcb"])


def _reference_forward(x, raw, hidden_size=64):
    """Pure-JAX f32 reference (PyTorch gate order [i, f, g, o])."""
    H = hidden_size
    B, T, _ = x.shape
    w_ih_t = jnp.transpose(raw["w_ih"])
    w_hh_t = jnp.transpose(raw["w_hh"])
    b = (raw["b_ih"] + raw["b_hh"]).reshape(1, 4 * H)
    h = jnp.zeros((B, H), jnp.float32)
    c = jnp.zeros((B, H), jnp.float32)
    for t in range(T):
        gates = x[:, t, :] @ w_ih_t + h @ w_hh_t + b
        i_g = jax.nn.sigmoid(gates[:, 0 * H:1 * H])
        f_g = jax.nn.sigmoid(gates[:, 1 * H:2 * H])
        g_g = jnp.tanh(gates[:, 2 * H:3 * H])
        o_g = jax.nn.sigmoid(gates[:, 3 * H:4 * H])
        c = f_g * c + i_g * g_g
        h = o_g * jnp.tanh(c)
    return h @ jnp.transpose(raw["fc_w"]) + raw["fc_b"]


if __name__ == "__main__":
    key = jax.random.PRNGKey(0)
    k_x, k_p = jax.random.split(key)

    batch, seq, input_size, hidden_size, output_size = 2, 8, 2, 64, 2
    x = jax.random.normal(k_x, (batch, seq, input_size), jnp.float32)

    raw = init_params(k_p, input_size, hidden_size, output_size)
    packed = pack_params(raw, input_size, hidden_size, output_size)

    out = lstm_model_forward(x, packed, output_size=output_size)
    out = jax.block_until_ready(out)

    ref = _reference_forward(x, raw, hidden_size)
    assert out.shape == (batch, output_size)
    # bf16 MXU operands (h, W_hh, fc_w) vs f32 reference -> loosened tolerance.
    assert jnp.allclose(out, ref, atol=2e-2, rtol=2e-2), (out, ref)

    print("KERNEL_OK")
</pallas_src>

<mosaic_0001>
module attributes {stable_mosaic.version = 11 : i64} {
  func.func @lstm_fc_kernel(%arg0: memref<16x128xf32, #tpu.memory_space<vmem>>, %arg1: memref<128x256xf32, #tpu.memory_space<vmem>>, %arg2: memref<64x256xbf16, #tpu.memory_space<vmem>>, %arg3: memref<1x256xf32, #tpu.memory_space<vmem>>, %arg4: memref<64x128xbf16, #tpu.memory_space<vmem>>, %arg5: memref<1x128xf32, #tpu.memory_space<vmem>>, %arg6: memref<2x2xf32, #tpu.memory_space<vmem>>, %arg7: memref<16x256xf32, #tpu.memory_space<vmem>>) attributes {dimension_semantics = [], scalar_prefetch = 0 : i64, scratch_operands = 1 : i64, tpu.core_type = #tpu.core_type<tc>} {
    %c0 = arith.constant 0 : index
    %c0_0 = arith.constant 0 : index
    %0 = vector.load %arg0[%c0, %c0_0] : memref<16x128xf32, #tpu.memory_space<vmem>>, vector<16x128xf32>
    %c0_1 = arith.constant 0 : index
    %c0_2 = arith.constant 0 : index
    %1 = vector.load %arg1[%c0_1, %c0_2] : memref<128x256xf32, #tpu.memory_space<vmem>>, vector<128x256xf32>
    %cst = arith.constant dense<0.000000e+00> : vector<16x256xf32>
    %2 = tpu.matmul %0, %1, %cst {dimension_numbers = #tpu.dot_dimension_numbers<[1], [0], [0], [1], [0, 0, 1, 1], [], []>} : vector<16x128xf32>, vector<128x256xf32>, vector<16x256xf32> -> vector<16x256xf32>
    %c0_3 = arith.constant 0 : index
    %c0_4 = arith.constant 0 : index
    %3 = vector.load %arg3[%c0_3, %c0_4] : memref<1x256xf32, #tpu.memory_space<vmem>>, vector<1x256xf32>
    %4 = vector.broadcast %3 : vector<1x256xf32> to vector<16x256xf32>
    %5 = arith.addf %2, %4 : vector<16x256xf32>
    %c0_5 = arith.constant 0 : index
    %c0_6 = arith.constant 0 : index
    %6 = vector.load %arg7[%c0_5, %c0_6] : memref<16x256xf32, #tpu.memory_space<vmem>>, vector<16x256xf32>
    tpu.vector_store %arg7[%c0_5, %c0_6], %5 {strides = array<i32>} : memref<16x256xf32, #tpu.memory_space<vmem>>, vector<16x256xf32>,
    %cst_7 = arith.constant 0.000000e+00 : f32
    %7 = vector.broadcast %cst_7 : f32 to vector<2x64xf32>
    %cst_8 = arith.constant 0.000000e+00 : f32
    %8 = vector.broadcast %cst_8 : f32 to vector<2x64xf32>
    %c0_9 = arith.constant 0 : index
    %c0_10 = arith.constant 0 : index
    %9 = vector.load %arg7[%c0_9, %c0_10] : memref<16x256xf32, #tpu.memory_space<vmem>>, vector<2x256xf32>
    %10 = arith.truncf %7 : vector<2x64xf32> to vector<2x64xbf16>
    %c0_11 = arith.constant 0 : index
    %c0_12 = arith.constant 0 : index
    %11 = vector.load %arg2[%c0_11, %c0_12] : memref<64x256xbf16, #tpu.memory_space<vmem>>, vector<64x256xbf16>
    %cst_13 = arith.constant dense<0.000000e+00> : vector<2x256xf32>
    %12 = tpu.matmul %10, %11, %cst_13 {dimension_numbers = #tpu.dot_dimension_numbers<[1], [0], [0], [1], [0, 0, 1, 1], [], []>} : vector<2x64xbf16>, vector<64x256xbf16>, vector<2x256xf32> -> vector<2x256xf32>
    %13 = arith.addf %9, %12 : vector<2x256xf32>
    %14 = vector.extract_strided_slice %13 {offsets = [0, 128], sizes = [2, 64], strides = [1, 1]} : vector<2x256xf32> to vector<2x64xf32>
    %15 = math.tanh %14 : vector<2x64xf32>
    %16 = vector.extract_strided_slice %13 {offsets = [0, 0], sizes = [2, 128], strides = [1, 1]} : vector<2x256xf32> to vector<2x128xf32>
    %17 = arith.negf %16 : vector<2x128xf32>
    %18 = math.exp %17 : vector<2x128xf32>
    %cst_14 = arith.constant 1.000000e+00 : f32
    %19 = vector.broadcast %cst_14 : f32 to vector<2x128xf32>
    %20 = arith.addf %19, %18 : vector<2x128xf32>
    %21 = arith.divf %19, %20 : vector<2x128xf32>
    %22 = vector.extract_strided_slice %13 {offsets = [0, 192], sizes = [2, 64], strides = [1, 1]} : vector<2x256xf32> to vector<2x64xf32>
    %23 = arith.negf %22 : vector<2x64xf32>
    %24 = math.exp %23 : vector<2x64xf32>
    %cst_15 = arith.constant 1.000000e+00 : f32
    %25 = vector.broadcast %cst_15 : f32 to vector<2x64xf32>
    %26 = arith.addf %25, %24 : vector<2x64xf32>
    %27 = arith.divf %25, %26 : vector<2x64xf32>
    %28 = vector.extract_strided_slice %21 {offsets = [0, 0], sizes = [2, 64], strides = [1, 1]} : vector<2x128xf32> to vector<2x64xf32>
    %29 = vector.extract_strided_slice %21 {offsets = [0, 64], sizes = [2, 64], strides = [1, 1]} : vector<2x128xf32> to vector<2x64xf32>
    %30 = arith.mulf %29, %8 : vector<2x64xf32>
    %31 = arith.mulf %28, %15 : vector<2x64xf32>
    %32 = arith.addf %30, %31 : vector<2x64xf32>
    %33 = math.tanh %32 : vector<2x64xf32>
    %34 = arith.mulf %27, %33 : vector<2x64xf32>
    %c2 = arith.constant 2 : index
    %c0_16 = arith.constant 0 : index
    %35 = vector.load %arg7[%c2, %c0_16] : memref<16x256xf32, #tpu.memory_space<vmem>>, vector<2x256xf32>
    %36 = arith.truncf %34 : vector<2x64xf32> to vector<2x64xbf16>
    %c0_17 = arith.constant 0 : index
    %c0_18 = arith.constant 0 : index
    %37 = vector.load %arg2[%c0_17, %c0_18] : memref<64x256xbf16, #tpu.memory_space<vmem>>, vector<64x256xbf16>
    %cst_19 = arith.constant dense<0.000000e+00> : vector<2x256xf32>
    %38 = tpu.matmul %36, %37, %cst_19 {dimension_numbers = #tpu.dot_dimension_numbers<[1], [0], [0], [1], [0, 0, 1, 1], [], []>} : vector<2x64xbf16>, vector<64x256xbf16>, vector<2x256xf32> -> vector<2x256xf32>
    %39 = arith.addf %35, %38 : vector<2x256xf32>
    %40 = vector.extract_strided_slice %39 {offsets = [0, 128], sizes = [2, 64], strides = [1, 1]} : vector<2x256xf32> to vector<2x64xf32>
    %41 = math.tanh %40 : vector<2x64xf32>
    %42 = vector.extract_strided_slice %39 {offsets = [0, 0], sizes = [2, 128], strides = [1, 1]} : vector<2x256xf32> to vector<2x128xf32>
    %43 = arith.negf %42 : vector<2x128xf32>
    %44 = math.exp %43 : vector<2x128xf32>
    %cst_20 = arith.constant 1.000000e+00 : f32
    %45 = vector.broadcast %cst_20 : f32 to vector<2x128xf32>
    %46 = arith.addf %45, %44 : vector<2x128xf32>
    %47 = arith.divf %45, %46 : vector<2x128xf32>
    %48 = vector.extract_strided_slice %39 {offsets = [0, 192], sizes = [2, 64], strides = [1, 1]} : vector<2x256xf32> to vector<2x64xf32>
    %49 = arith.negf %48 : vector<2x64xf32>
    %50 = math.exp %49 : vector<2x64xf32>
    %cst_21 = arith.constant 1.000000e+00 : f32
    %51 = vector.broadcast %cst_21 : f32 to vector<2x64xf32>
    %52 = arith.addf %51, %50 : vector<2x64xf32>
    %53 = arith.divf %51, %52 : vector<2x64xf32>
    %54 = vector.extract_strided_slice %47 {offsets = [0, 0], sizes = [2, 64], strides = [1, 1]} : vector<2x128xf32> to vector<2x64xf32>
    %55 = vector.extract_strided_slice %47 {offsets = [0, 64], sizes = [2, 64], strides = [1, 1]} : vector<2x128xf32> to vector<2x64xf32>
    %56 = arith.mulf %55, %32 : vector<2x64xf32>
    %57 = arith.mulf %54, %41 : vector<2x64xf32>
    %58 = arith.addf %56, %57 : vector<2x64xf32>
    %59 = math.tanh %58 : vector<2x64xf32>
    %60 = arith.mulf %53, %59 : vector<2x64xf32>
    %c4 = arith.constant 4 : index
    %c0_22 = arith.constant 0 : index
    %61 = vector.load %arg7[%c4, %c0_22] : memref<16x256xf32, #tpu.memory_space<vmem>>, vector<2x256xf32>
    %62 = arith.truncf %60 : vector<2x64xf32> to vector<2x64xbf16>
    %c0_23 = arith.constant 0 : index
    %c0_24 = arith.constant 0 : index
    %63 = vector.load %arg2[%c0_23, %c0_24] : memref<64x256xbf16, #tpu.memory_space<vmem>>, vector<64x256xbf16>
    %cst_25 = arith.constant dense<0.000000e+00> : vector<2x256xf32>
    %64 = tpu.matmul %62, %63, %cst_25 {dimension_numbers = #tpu.dot_dimension_numbers<[1], [0], [0], [1], [0, 0, 1, 1], [], []>} : vector<2x64xbf16>, vector<64x256xbf16>, vector<2x256xf32> -> vector<2x256xf32>
    %65 = arith.addf %61, %64 : vector<2x256xf32>
    %66 = vector.extract_strided_slice %65 {offsets = [0, 128], sizes = [2, 64], strides = [1, 1]} : vector<2x256xf32> to vector<2x64xf32>
    %67 = math.tanh %66 : vector<2x64xf32>
    %68 = vector.extract_strided_slice %65 {offsets = [0, 0], sizes = [2, 128], strides = [1, 1]} : vector<2x256xf32> to vector<2x128xf32>
    %69 = arith.negf %68 : vector<2x128xf32>
    %70 = math.exp %69 : vector<2x128xf32>
    %cst_26 = arith.constant 1.000000e+00 : f32
    %71 = vector.broadcast %cst_26 : f32 to vector<2x128xf32>
    %72 = arith.addf %71, %70 : vector<2x128xf32>
    %73 = arith.divf %71, %72 : vector<2x128xf32>
    %74 = vector.extract_strided_slice %65 {offsets = [0, 192], sizes = [2, 64], strides = [1, 1]} : vector<2x256xf32> to vector<2x64xf32>
    %75 = arith.negf %74 : vector<2x64xf32>
    %76 = math.exp %75 : vector<2x64xf32>
    %cst_27 = arith.constant 1.000000e+00 : f32
    %77 = vector.broadcast %cst_27 : f32 to vector<2x64xf32>
    %78 = arith.addf %77, %76 : vector<2x64xf32>
    %79 = arith.divf %77, %78 : vector<2x64xf32>
    %80 = vector.extract_strided_slice %73 {offsets = [0, 0], sizes = [2, 64], strides = [1, 1]} : vector<2x128xf32> to vector<2x64xf32>
    %81 = vector.extract_strided_slice %73 {offsets = [0, 64], sizes = [2, 64], strides = [1, 1]} : vector<2x128xf32> to vector<2x64xf32>
    %82 = arith.mulf %81, %58 : vector<2x64xf32>
    %83 = arith.mulf %80, %67 : vector<2x64xf32>
    %84 = arith.addf %82, %83 : vector<2x64xf32>
    %85 = math.tanh %84 : vector<2x64xf32>
    %86 = arith.mulf %79, %85 : vector<2x64xf32>
    %c6 = arith.constant 6 : index
    %c0_28 = arith.constant 0 : index
    %87 = vector.load %arg7[%c6, %c0_28] : memref<16x256xf32, #tpu.memory_space<vmem>>, vector<2x256xf32>
    %88 = arith.truncf %86 : vector<2x64xf32> to vector<2x64xbf16>
    %c0_29 = arith.constant 0 : index
    %c0_30 = arith.constant 0 : index
    %89 = vector.load %arg2[%c0_29, %c0_30] : memref<64x256xbf16, #tpu.memory_space<vmem>>, vector<64x256xbf16>
    %cst_31 = arith.constant dense<0.000000e+00> : vector<2x256xf32>
    %90 = tpu.matmul %88, %89, %cst_31 {dimension_numbers = #tpu.dot_dimension_numbers<[1], [0], [0], [1], [0, 0, 1, 1], [], []>} : vector<2x64xbf16>, vector<64x256xbf16>, vector<2x256xf32> -> vector<2x256xf32>
    %91 = arith.addf %87, %90 : vector<2x256xf32>
    %92 = vector.extract_strided_slice %91 {offsets = [0, 128], sizes = [2, 64], strides = [1, 1]} : vector<2x256xf32> to vector<2x64xf32>
    %93 = math.tanh %92 : vector<2x64xf32>
    %94 = vector.extract_strided_slice %91 {offsets = [0, 0], sizes = [2, 128], strides = [1, 1]} : vector<2x256xf32> to vector<2x128xf32>
    %95 = arith.negf %94 : vector<2x128xf32>
    %96 = math.exp %95 : vector<2x128xf32>
    %cst_32 = arith.constant 1.000000e+00 : f32
    %97 = vector.broadcast %cst_32 : f32 to vector<2x128xf32>
    %98 = arith.addf %97, %96 : vector<2x128xf32>
    %99 = arith.divf %97, %98 : vector<2x128xf32>
    %100 = vector.extract_strided_slice %91 {offsets = [0, 192], sizes = [2, 64], strides = [1, 1]} : vector<2x256xf32> to vector<2x64xf32>
    %101 = arith.negf %100 : vector<2x64xf32>
    %102 = math.exp %101 : vector<2x64xf32>
    %cst_33 = arith.constant 1.000000e+00 : f32
    %103 = vector.broadcast %cst_33 : f32 to vector<2x64xf32>
    %104 = arith.addf %103, %102 : vector<2x64xf32>
    %105 = arith.divf %103, %104 : vector<2x64xf32>
    %106 = vector.extract_strided_slice %99 {offsets = [0, 0], sizes = [2, 64], strides = [1, 1]} : vector<2x128xf32> to vector<2x64xf32>
    %107 = vector.extract_strided_slice %99 {offsets = [0, 64], sizes = [2, 64], strides = [1, 1]} : vector<2x128xf32> to vector<2x64xf32>
    %108 = arith.mulf %107, %84 : vector<2x64xf32>
    %109 = arith.mulf %106, %93 : vector<2x64xf32>
    %110 = arith.addf %108, %109 : vector<2x64xf32>
    %111 = math.tanh %110 : vector<2x64xf32>
    %112 = arith.mulf %105, %111 : vector<2x64xf32>
    %c8 = arith.constant 8 : index
    %c0_34 = arith.constant 0 : index
    %113 = vector.load %arg7[%c8, %c0_34] : memref<16x256xf32, #tpu.memory_space<vmem>>, vector<2x256xf32>
    %114 = arith.truncf %112 : vector<2x64xf32> to vector<2x64xbf16>
    %c0_35 = arith.constant 0 : index
    %c0_36 = arith.constant 0 : index
    %115 = vector.load %arg2[%c0_35, %c0_36] : memref<64x256xbf16, #tpu.memory_space<vmem>>, vector<64x256xbf16>
    %cst_37 = arith.constant dense<0.000000e+00> : vector<2x256xf32>
    %116 = tpu.matmul %114, %115, %cst_37 {dimension_numbers = #tpu.dot_dimension_numbers<[1], [0], [0], [1], [0, 0, 1, 1], [], []>} : vector<2x64xbf16>, vector<64x256xbf16>, vector<2x256xf32> -> vector<2x256xf32>
    %117 = arith.addf %113, %116 : vector<2x256xf32>
    %118 = vector.extract_strided_slice %117 {offsets = [0, 128], sizes = [2, 64], strides = [1, 1]} : vector<2x256xf32> to vector<2x64xf32>
    %119 = math.tanh %118 : vector<2x64xf32>
    %120 = vector.extract_strided_slice %117 {offsets = [0, 0], sizes = [2, 128], strides = [1, 1]} : vector<2x256xf32> to vector<2x128xf32>
    %121 = arith.negf %120 : vector<2x128xf32>
    %122 = math.exp %121 : vector<2x128xf32>
    %cst_38 = arith.constant 1.000000e+00 : f32
    %123 = vector.broadcast %cst_38 : f32 to vector<2x128xf32>
    %124 = arith.addf %123, %122 : vector<2x128xf32>
    %125 = arith.divf %123, %124 : vector<2x128xf32>
    %126 = vector.extract_strided_slice %117 {offsets = [0, 192], sizes = [2, 64], strides = [1, 1]} : vector<2x256xf32> to vector<2x64xf32>
    %127 = arith.negf %126 : vector<2x64xf32>
    %128 = math.exp %127 : vector<2x64xf32>
    %cst_39 = arith.constant 1.000000e+00 : f32
    %129 = vector.broadcast %cst_39 : f32 to vector<2x64xf32>
    %130 = arith.addf %129, %128 : vector<2x64xf32>
    %131 = arith.divf %129, %130 : vector<2x64xf32>
    %132 = vector.extract_strided_slice %125 {offsets = [0, 0], sizes = [2, 64], strides = [1, 1]} : vector<2x128xf32> to vector<2x64xf32>
    %133 = vector.extract_strided_slice %125 {offsets = [0, 64], sizes = [2, 64], strides = [1, 1]} : vector<2x128xf32> to vector<2x64xf32>
    %134 = arith.mulf %133, %110 : vector<2x64xf32>
    %135 = arith.mulf %132, %119 : vector<2x64xf32>
    %136 = arith.addf %134, %135 : vector<2x64xf32>
    %137 = math.tanh %136 : vector<2x64xf32>
    %138 = arith.mulf %131, %137 : vector<2x64xf32>
    %c10 = arith.constant 10 : index
    %c0_40 = arith.constant 0 : index
    %139 = vector.load %arg7[%c10, %c0_40] : memref<16x256xf32, #tpu.memory_space<vmem>>, vector<2x256xf32>
    %140 = arith.truncf %138 : vector<2x64xf32> to vector<2x64xbf16>
    %c0_41 = arith.constant 0 : index
    %c0_42 = arith.constant 0 : index
    %141 = vector.load %arg2[%c0_41, %c0_42] : memref<64x256xbf16, #tpu.memory_space<vmem>>, vector<64x256xbf16>
    %cst_43 = arith.constant dense<0.000000e+00> : vector<2x256xf32>
    %142 = tpu.matmul %140, %141, %cst_43 {dimension_numbers = #tpu.dot_dimension_numbers<[1], [0], [0], [1], [0, 0, 1, 1], [], []>} : vector<2x64xbf16>, vector<64x256xbf16>, vector<2x256xf32> -> vector<2x256xf32>
    %143 = arith.addf %139, %142 : vector<2x256xf32>
    %144 = vector.extract_strided_slice %143 {offsets = [0, 128], sizes = [2, 64], strides = [1, 1]} : vector<2x256xf32> to vector<2x64xf32>
    %145 = math.tanh %144 : vector<2x64xf32>
    %146 = vector.extract_strided_slice %143 {offsets = [0, 0], sizes = [2, 128], strides = [1, 1]} : vector<2x256xf32> to vector<2x128xf32>
    %147 = arith.negf %146 : vector<2x128xf32>
    %148 = math.exp %147 : vector<2x128xf32>
    %cst_44 = arith.constant 1.000000e+00 : f32
    %149 = vector.broadcast %cst_44 : f32 to vector<2x128xf32>
    %150 = arith.addf %149, %148 : vector<2x128xf32>
    %151 = arith.divf %149, %150 : vector<2x128xf32>
    %152 = vector.extract_strided_slice %143 {offsets = [0, 192], sizes = [2, 64], strides = [1, 1]} : vector<2x256xf32> to vector<2x64xf32>
    %153 = arith.negf %152 : vector<2x64xf32>
    %154 = math.exp %153 : vector<2x64xf32>
    %cst_45 = arith.constant 1.000000e+00 : f32
    %155 = vector.broadcast %cst_45 : f32 to vector<2x64xf32>
    %156 = arith.addf %155, %154 : vector<2x64xf32>
    %157 = arith.divf %155, %156 : vector<2x64xf32>
    %158 = vector.extract_strided_slice %151 {offsets = [0, 0], sizes = [2, 64], strides = [1, 1]} : vector<2x128xf32> to vector<2x64xf32>
    %159 = vector.extract_strided_slice %151 {offsets = [0, 64], sizes = [2, 64], strides = [1, 1]} : vector<2x128xf32> to vector<2x64xf32>
    %160 = arith.mulf %159, %136 : vector<2x64xf32>
    %161 = arith.mulf %158, %145 : vector<2x64xf32>
    %162 = arith.addf %160, %161 : vector<2x64xf32>
    %163 = math.tanh %162 : vector<2x64xf32>
    %164 = arith.mulf %157, %163 : vector<2x64xf32>
    %c12 = arith.constant 12 : index
    %c0_46 = arith.constant 0 : index
    %165 = vector.load %arg7[%c12, %c0_46] : memref<16x256xf32, #tpu.memory_space<vmem>>, vector<2x256xf32>
    %166 = arith.truncf %164 : vector<2x64xf32> to vector<2x64xbf16>
    %c0_47 = arith.constant 0 : index
    %c0_48 = arith.constant 0 : index
    %167 = vector.load %arg2[%c0_47, %c0_48] : memref<64x256xbf16, #tpu.memory_space<vmem>>, vector<64x256xbf16>
    %cst_49 = arith.constant dense<0.000000e+00> : vector<2x256xf32>
    %168 = tpu.matmul %166, %167, %cst_49 {dimension_numbers = #tpu.dot_dimension_numbers<[1], [0], [0], [1], [0, 0, 1, 1], [], []>} : vector<2x64xbf16>, vector<64x256xbf16>, vector<2x256xf32> -> vector<2x256xf32>
    %169 = arith.addf %165, %168 : vector<2x256xf32>
    %170 = vector.extract_strided_slice %169 {offsets = [0, 128], sizes = [2, 64], strides = [1, 1]} : vector<2x256xf32> to vector<2x64xf32>
    %171 = math.tanh %170 : vector<2x64xf32>
    %172 = vector.extract_strided_slice %169 {offsets = [0, 0], sizes = [2, 128], strides = [1, 1]} : vector<2x256xf32> to vector<2x128xf32>
    %173 = arith.negf %172 : vector<2x128xf32>
    %174 = math.exp %173 : vector<2x128xf32>
    %cst_50 = arith.constant 1.000000e+00 : f32
    %175 = vector.broadcast %cst_50 : f32 to vector<2x128xf32>
    %176 = arith.addf %175, %174 : vector<2x128xf32>
    %177 = arith.divf %175, %176 : vector<2x128xf32>
    %178 = vector.extract_strided_slice %169 {offsets = [0, 192], sizes = [2, 64], strides = [1, 1]} : vector<2x256xf32> to vector<2x64xf32>
    %179 = arith.negf %178 : vector<2x64xf32>
    %180 = math.exp %179 : vector<2x64xf32>
    %cst_51 = arith.constant 1.000000e+00 : f32
    %181 = vector.broadcast %cst_51 : f32 to vector<2x64xf32>
    %182 = arith.addf %181, %180 : vector<2x64xf32>
    %183 = arith.divf %181, %182 : vector<2x64xf32>
    %184 = vector.extract_strided_slice %177 {offsets = [0, 0], sizes = [2, 64], strides = [1, 1]} : vector<2x128xf32> to vector<2x64xf32>
    %185 = vector.extract_strided_slice %177 {offsets = [0, 64], sizes = [2, 64], strides = [1, 1]} : vector<2x128xf32> to vector<2x64xf32>
    %186 = arith.mulf %185, %162 : vector<2x64xf32>
    %187 = arith.mulf %184, %171 : vector<2x64xf32>
    %188 = arith.addf %186, %187 : vector<2x64xf32>
    %189 = math.tanh %188 : vector<2x64xf32>
    %190 = arith.mulf %183, %189 : vector<2x64xf32>
    %c14 = arith.constant 14 : index
    %c0_52 = arith.constant 0 : index
    %191 = vector.load %arg7[%c14, %c0_52] : memref<16x256xf32, #tpu.memory_space<vmem>>, vector<2x256xf32>
    %192 = arith.truncf %190 : vector<2x64xf32> to vector<2x64xbf16>
    %c0_53 = arith.constant 0 : index
    %c0_54 = arith.constant 0 : index
    %193 = vector.load %arg2[%c0_53, %c0_54] : memref<64x256xbf16, #tpu.memory_space<vmem>>, vector<64x256xbf16>
    %cst_55 = arith.constant dense<0.000000e+00> : vector<2x256xf32>
    %194 = tpu.matmul %192, %193, %cst_55 {dimension_numbers = #tpu.dot_dimension_numbers<[1], [0], [0], [1], [0, 0, 1, 1], [], []>} : vector<2x64xbf16>, vector<64x256xbf16>, vector<2x256xf32> -> vector<2x256xf32>
    %195 = arith.addf %191, %194 : vector<2x256xf32>
    %196 = vector.extract_strided_slice %195 {offsets = [0, 128], sizes = [2, 64], strides = [1, 1]} : vector<2x256xf32> to vector<2x64xf32>
    %197 = math.tanh %196 : vector<2x64xf32>
    %198 = vector.extract_strided_slice %195 {offsets = [0, 0], sizes = [2, 128], strides = [1, 1]} : vector<2x256xf32> to vector<2x128xf32>
    %199 = arith.negf %198 : vector<2x128xf32>
    %200 = math.exp %199 : vector<2x128xf32>
    %cst_56 = arith.constant 1.000000e+00 : f32
    %201 = vector.broadcast %cst_56 : f32 to vector<2x128xf32>
    %202 = arith.addf %201, %200 : vector<2x128xf32>
    %203 = arith.divf %201, %202 : vector<2x128xf32>
    %204 = vector.extract_strided_slice %195 {offsets = [0, 192], sizes = [2, 64], strides = [1, 1]} : vector<2x256xf32> to vector<2x64xf32>
    %205 = arith.negf %204 : vector<2x64xf32>
    %206 = math.exp %205 : vector<2x64xf32>
    %cst_57 = arith.constant 1.000000e+00 : f32
    %207 = vector.broadcast %cst_57 : f32 to vector<2x64xf32>
    %208 = arith.addf %207, %206 : vector<2x64xf32>
    %209 = arith.divf %207, %208 : vector<2x64xf32>
    %210 = vector.extract_strided_slice %203 {offsets = [0, 0], sizes = [2, 64], strides = [1, 1]} : vector<2x128xf32> to vector<2x64xf32>
    %211 = vector.extract_strided_slice %203 {offsets = [0, 64], sizes = [2, 64], strides = [1, 1]} : vector<2x128xf32> to vector<2x64xf32>
    %212 = arith.mulf %211, %188 : vector<2x64xf32>
    %213 = arith.mulf %210, %197 : vector<2x64xf32>
    %214 = arith.addf %212, %213 : vector<2x64xf32>
    %215 = math.tanh %214 : vector<2x64xf32>
    %216 = arith.mulf %209, %215 : vector<2x64xf32>
    %217 = arith.truncf %216 : vector<2x64xf32> to vector<2x64xbf16>
    %c0_58 = arith.constant 0 : index
    %c0_59 = arith.constant 0 : index
    %218 = vector.load %arg4[%c0_58, %c0_59] : memref<64x128xbf16, #tpu.memory_space<vmem>>, vector<64x128xbf16>
    %cst_60 = arith.constant dense<0.000000e+00> : vector<2x128xf32>
    %219 = tpu.matmul %217, %218, %cst_60 {dimension_numbers = #tpu.dot_dimension_numbers<[1], [0], [0], [1], [0, 0, 1, 1], [], []>} : vector<2x64xbf16>, vector<64x128xbf16>, vector<2x128xf32> -> vector<2x128xf32>
    %c0_61 = arith.constant 0 : index
    %c0_62 = arith.constant 0 : index
    %220 = vector.load %arg5[%c0_61, %c0_62] : memref<1x128xf32, #tpu.memory_space<vmem>>, vector<1x128xf32>
    %221 = vector.broadcast %220 : vector<1x128xf32> to vector<2x128xf32>
    %222 = arith.addf %219, %221 : vector<2x128xf32>
    %223 = vector.extract_strided_slice %222 {offsets = [0, 0], sizes = [2, 2], strides = [1, 1]} : vector<2x128xf32> to vector<2x2xf32>
    %c0_63 = arith.constant 0 : index
    %c0_64 = arith.constant 0 : index
    %224 = vector.load %arg6[%c0_63, %c0_64] : memref<2x2xf32, #tpu.memory_space<vmem>>, vector<2x2xf32>
    tpu.vector_store %arg6[%c0_63, %c0_64], %223 {strides = array<i32>} : memref<2x2xf32, #tpu.memory_space<vmem>>, vector<2x2xf32>,
    return
  }
}

</mosaic_0001>

<llo_original>
// kernel: lstm_model_forward.1
$region0: #{lstm_model_forward.1}
  #allocation0 [shape = 'u32[]', space=smem, size = 0x4, offset = 0x4, fixed_abs, tag = 'smem constant byte address 0x4 - core index']
  #allocation1 [shape = 'u32[144,128]{1,0:T(1,128)}', space=vmem, size = 0x12000, scoped, tag = 'internal scratch']
  #allocation2 [shape = 'f32[16,256]{1,0:T(8,128)}', space=vmem, size = 0x4000, scoped, tag = 'scratch operand']
  %s0 = inlined_call_operand.vmem [shape: f32[16,128], index: 0, kind: input, shape index: {}]
  %s1 = inlined_call_operand.hbm [shape: f32[128,256], index: 1, kind: input, shape index: {}]
  %s2 = inlined_call_operand.vmem [shape: bf16[64,256], index: 2, kind: input, shape index: {}]
  %s3 = inlined_call_operand.vmem [shape: f32[1,256], index: 3, kind: input, shape index: {}]
  %s4 = inlined_call_operand.hbm [shape: bf16[64,128], index: 4, kind: input, shape index: {}]
  %s5 = inlined_call_operand.vmem [shape: f32[1,128], index: 5, kind: input, shape index: {}]
  %s6 = inlined_call_operand.hbm [shape: f32[2,2], index: 6, kind: output, shape index: {}]
  %s7 = sld [smem:[#allocation0]]
  $region42: #{lstm_model_forward.1} parent=0
    _
  %s9 = ssub.s32 1, %s7
  %s10 = scalar_select 0, %s9, %s7
  $region1: #{lstm_model_forward.1} parent=0
    #allocation3 [shape = 'u8[131072]{0}', space=vmem, size = 0x20000, scoped, tag = 'input window, operand 1, single buffered']
    #allocation4 [shape = 's32[1]{0}', space=sflag, size = 0x4, scoped, tag = 'scoped memory for lstm_model_forward.1']
    #allocation5 [shape = 's32[1]{0}', space=sflag, size = 0x4, scoped, tag = 'scoped memory for lstm_model_forward.1']
    #allocation6 [shape = 'u8[16384]{0}', space=vmem, size = 0x4000, scoped, tag = 'input window, operand 4, single buffered']
    #allocation7 [shape = 's32[1]{0}', space=sflag, size = 0x4, scoped, tag = 'scoped memory for lstm_model_forward.1']
    #allocation8 [shape = 'u8[1024]{0}', space=vmem, size = 0x400, scoped, tag = 'output window, operand 0, single buffered']
    %11 = vsyncpa [#allocation4], 0
    %12 = vsyncpa [#allocation7], 0
    %13 = vsyncpa [#allocation5], 0
    // Predicated region
    $region2: #{lstm_model_forward.1} parent=1 // pred_check
      _
    $region3: #{lstm_model_forward.1} parent=1 // pred_check_branch
      %15 = sbr.rel (0) target = $region5
    $region4: #{lstm_model_forward.1} parent=1 // pred_region
      _
    $region5: #{lstm_model_forward.1} parent=1 // pred_fallthru
      _
    // Predicated region
    $region6: #{lstm_model_forward.1} parent=1 // pred_check
      _
    $region7: #{lstm_model_forward.1} parent=1 // pred_check_branch
      %17 = sbr.rel (0) target = $region9
    $region8: #{lstm_model_forward.1} parent=1 // pred_region
      %s19 = ssub.s32 4096, 4096
      %20 = vsyncadd [#allocation4], %s19
      %s21 = sshll.u32 [#allocation3], 4
      %s22 = int_to_ptr.vmem [resolvable:$true] %s21
      %27 = dma.hbm_to_vmem [thread:$0]  %s1, 4096, %s22, [#allocation4], 256, 256, 16
    $region9: #{lstm_model_forward.1} parent=1 // pred_fallthru
      _
    // Predicated region
    $region10: #{lstm_model_forward.1} parent=1 // pred_check
      _
    $region11: #{lstm_model_forward.1} parent=1 // pred_check_branch
      %29 = sbr.rel (0) target = $region13
    $region12: #{lstm_model_forward.1} parent=1 // pred_region
      _
    $region13: #{lstm_model_forward.1} parent=1 // pred_fallthru
      _
    // Predicated region
    $region14: #{lstm_model_forward.1} parent=1 // pred_check
      _
    $region15: #{lstm_model_forward.1} parent=1 // pred_check_branch
      %31 = sbr.rel (0) target = $region17
    $region16: #{lstm_model_forward.1} parent=1 // pred_region
      _
    $region17: #{lstm_model_forward.1} parent=1 // pred_fallthru
      _
    // Predicated region
    $region18: #{lstm_model_forward.1} parent=1 // pred_check
      _
    $region19: #{lstm_model_forward.1} parent=1 // pred_check_branch
      %33 = sbr.rel (0) target = $region21
    $region20: #{lstm_model_forward.1} parent=1 // pred_region
      %s35 = ssub.s32 512, 512
      %36 = vsyncadd [#allocation7], %s35
      %s37 = sshll.u32 [#allocation6], 4
      %s38 = int_to_ptr.vmem [resolvable:$true] %s37
      %43 = dma.hbm_to_vmem [thread:$0]  %s4, 512, %s38, [#allocation7], 64, 64, 4
    $region21: #{lstm_model_forward.1} parent=1 // pred_fallthru
      _
    // Predicated region
    $region22: #{lstm_model_forward.1} parent=1 // pred_check
      _
    $region23: #{lstm_model_forward.1} parent=1 // pred_check_branch
      %45 = sbr.rel (0) target = $region25
    $region24: #{lstm_model_forward.1} parent=1 // pred_region
      _
    $region25: #{lstm_model_forward.1} parent=1 // pred_fallthru
      _
    // Predicated region
    $region26: #{lstm_model_forward.1} parent=1 // pred_check
      _
    $region27: #{lstm_model_forward.1} parent=1 // pred_check_branch
      %47 = sbr.rel (0) target = $region29
    $region28: #{lstm_model_forward.1} parent=1 // pred_region
      %48 = dma.done [#allocation4], 4096
    $region29: #{lstm_model_forward.1} parent=1 // pred_fallthru
      _
    // Predicated region
    $region30: #{lstm_model_forward.1} parent=1 // pred_check
      _
    $region31: #{lstm_model_forward.1} parent=1 // pred_check_branch
      %50 = sbr.rel (0) target = $region33
    $region32: #{lstm_model_forward.1} parent=1 // pred_region
      %51 = dma.done [#allocation7], 512
    $region33: #{lstm_model_forward.1} parent=1 // pred_fallthru
      _
    %v53 = vld [vmem:[%s0] sm:$0xff]
    %v54 = vld [vmem:[%s0 + $0x8] sm:$0xff]
    %v55 = vld [vmem:[#allocation3] sm:$0xff]
    %v56 = vld [vmem:[#allocation3 + $0x8] sm:$0xff]
    %v57 = vld [vmem:[#allocation3 + $0x10] sm:$0xff]
    %v58 = vld [vmem:[#allocation3 + $0x18] sm:$0xff]
    %v59 = vld [vmem:[#allocation3 + $0x20] sm:$0xff]
    %v60 = vld [vmem:[#allocation3 + $0x28] sm:$0xff]
    %v61 = vld [vmem:[#allocation3 + $0x30] sm:$0xff]
    %v62 = vld [vmem:[#allocation3 + $0x38] sm:$0xff]
    %v63 = vld [vmem:[#allocation3 + $0x40] sm:$0xff]
    %v64 = vld [vmem:[#allocation3 + $0x48] sm:$0xff]
    %v65 = vld [vmem:[#allocation3 + $0x50] sm:$0xff]
    %v66 = vld [vmem:[#allocation3 + $0x58] sm:$0xff]
    %v67 = vld [vmem:[#allocation3 + $0x60] sm:$0xff]
    %v68 = vld [vmem:[#allocation3 + $0x68] sm:$0xff]
    %v69 = vld [vmem:[#allocation3 + $0x70] sm:$0xff]
    %v70 = vld [vmem:[#allocation3 + $0x78] sm:$0xff]
    %v71 = vld [vmem:[#allocation3 + $0x80] sm:$0xff]
    %v72 = vld [vmem:[#allocation3 + $0x88] sm:$0xff]
    %v73 = vld [vmem:[#allocation3 + $0x90] sm:$0xff]
    %v74 = vld [vmem:[#allocation3 + $0x98] sm:$0xff]
    %v75 = vld [vmem:[#allocation3 + $0xa0] sm:$0xff]
    %v76 = vld [vmem:[#allocation3 + $0xa8] sm:$0xff]
    %v77 = vld [vmem:[#allocation3 + $0xb0] sm:$0xff]
    %v78 = vld [vmem:[#allocation3 + $0xb8] sm:$0xff]
    %v79 = vld [vmem:[#allocation3 + $0xc0] sm:$0xff]
    %v80 = vld [vmem:[#allocation3 + $0xc8] sm:$0xff]
    %v81 = vld [vmem:[#allocation3 + $0xd0] sm:$0xff]
    %v82 = vld [vmem:[#allocation3 + $0xd8] sm:$0xff]
    %v83 = vld [vmem:[#allocation3 + $0xe0] sm:$0xff]
    %v84 = vld [vmem:[#allocation3 + $0xe8] sm:$0xff]
    %v85 = vld [vmem:[#allocation3 + $0xf0] sm:$0xff]
    %v86 = vld [vmem:[#allocation3 + $0xf8] sm:$0xff]
    %v87 = vld [vmem:[%s3] sm:$0x3]
    %v89 = vlaneseq
    %v90 = vshrl.u32 %v89, 7
    %v91 = vsub.s32 0, %v90
    %v92 = vrot.slane %v87, %v91
    %v93 = vlaneseq
    %v94 = vshrl.u32 %v93, 7
    %v95 = vsub.s32 1, %v94
    %v96 = vrot.slane %v87, %v95
    %99 = vmatprep.subr.mxu0 %v56
    %100 = vmatpush1.msra.mxu0 %v55
    %101 = vmatprep.subr.mxu0 %v58
    %102 = vmatpush1.msra.mxu0 %v57
    %103 = vmatprep.subr.mxu0 %v60
    %104 = vmatpush1.msra.mxu0 %v59
    %105 = vmatprep.subr.mxu0 %v62
    %106 = vmatpush1.msra.mxu0 %v61
    %107 = vmatprep.subr.mxu0 %v64
    %108 = vmatpush1.msra.mxu0 %v63
    %109 = vmatprep.subr.mxu0 %v66
    %110 = vmatpush1.msra.mxu0 %v65
    %111 = vmatprep.subr.mxu0 %v68
    %112 = vmatpush1.msra.mxu0 %v67
    %113 = vmatprep.subr.mxu0 %v70
    %114 = vmatpush1.msra.mxu0 %v69
    %115 = vmatprep.subr.mxu0 %v72
    %116 = vmatpush1.msra.mxu0 %v71
    %117 = vmatprep.subr.mxu0 %v74
    %118 = vmatpush1.msra.mxu0 %v73
    %119 = vmatprep.subr.mxu0 %v76
    %120 = vmatpush1.msra.mxu0 %v75
    %121 = vmatprep.subr.mxu0 %v78
    %122 = vmatpush1.msra.mxu0 %v77
    %123 = vmatprep.subr.mxu0 %v80
    %124 = vmatpush1.msra.mxu0 %v79
    %125 = vmatprep.subr.mxu0 %v82
    %126 = vmatpush1.msra.mxu0 %v81
    %127 = vmatprep.subr.mxu0 %v84
    %128 = vmatpush1.msra.mxu0 %v83
    %129 = vmatprep.subr.mxu0 %v86
    %130 = vmatpush1.msra.mxu0 %v85
    %131 = vmatprep.subr.mxu0 0.0
    %132 = vmatpush1.msra.mxu0 0.0
    %133 = vmatprep.subr.mxu0 0.0
    %134 = vmatpush1.msra.mxu0 0.0
    %135 = vmatprep.subr.mxu0 0.0
    %136 = vmatpush1.msra.mxu0 0.0
    %137 = vmatprep.subr.mxu0 0.0
    %138 = vmatpush1.msra.mxu0 0.0
    %139 = vmatprep.subr.mxu0 0.0
    %140 = vmatpush1.msra.mxu0 0.0
    %141 = vmatprep.subr.mxu0 0.0
    %142 = vmatpush1.msra.mxu0 0.0
    %143 = vmatprep.subr.mxu0 0.0
    %144 = vmatpush1.msra.mxu0 0.0
    %145 = vmatprep.subr.mxu0 0.0
    %146 = vmatpush1.msra.mxu0 0.0
    %147 = vmatprep.subr.mxu0 0.0
    %148 = vmatpush1.msra.mxu0 0.0
    %149 = vmatprep.subr.mxu0 0.0
    %150 = vmatpush1.msra.mxu0 0.0
    %151 = vmatprep.subr.mxu0 0.0
    %152 = vmatpush1.msra.mxu0 0.0
    %153 = vmatprep.subr.mxu0 0.0
    %154 = vmatpush1.msra.mxu0 0.0
    %155 = vmatprep.subr.mxu0 0.0
    %156 = vmatpush1.msra.mxu0 0.0
    %157 = vmatprep.subr.mxu0 0.0
    %158 = vmatpush1.msra.mxu0 0.0
    %159 = vmatprep.subr.mxu0 0.0
    %160 = vmatpush1.msra.mxu0 0.0
    %161 = vmatprep.subr.mxu0 0.0
    %162 = vmatpush1.msra.mxu0 0.0
    %163 = vmatprep.mubr.f32.mxu0 0.0
    %164 = vmatmul.mubr.f32.gmra.mrb[0].mxu0 %v53
    %v165 = vpop.f32.mrb[0].mxu0
    %v166 = vadd.f32 %v92, %v165
    %v167 = vpop.f32.mrb[0].mxu0
    %v168 = vadd.f32 %v96, %v167
    %169 = vmatprep.mubr.f32.mxu0 0.0
    %170 = vmatmul.mubr.f32.gmra.mrb[0].mxu0 %v54
    %v171 = vpop.f32.mrb[0].mxu0
    %v172 = vadd.f32 %v92, %v171
    %v173 = vpop.f32.mrb[0].mxu0
    %v174 = vadd.f32 %v96, %v173
    %175 = vdwg.mxu0
    %176 = vst [vmem:[#allocation2] sm:$0xff] %v166
    %177 = vst [vmem:[#allocation2 + $0x8] sm:$0xff] %v168
    %178 = vst [vmem:[#allocation2 + $0x10] sm:$0xff] %v172
    %179 = vst [vmem:[#allocation2 + $0x18] sm:$0xff] %v174
    %v180 = vld [vmem:[#allocation2] sm:$0x3]
    %v181 = vld [vmem:[#allocation2 + $0x8] sm:$0x3]
    %v182 = vld [vmem:[%s2] sm:$0xff]
    %v183 = vld [vmem:[%s2 + $0x8] sm:$0xff]
    %v184 = vld [vmem:[%s2 + $0x10] sm:$0xff]
    %v185 = vld [vmem:[%s2 + $0x18] sm:$0xff]
    %v186 = vld [vmem:[%s2 + $0x20] sm:$0xff]
    %v187 = vld [vmem:[%s2 + $0x28] sm:$0xff]
    %v188 = vld [vmem:[%s2 + $0x30] sm:$0xff]
    %v189 = vld [vmem:[%s2 + $0x38] sm:$0xff]
    %v198 = vunpack.c.l.b16 %v182
    %v199 = vunpack.c.h.b16 %v182
    %v200 = vunpack.c.l.b16 %v183
    %v201 = vunpack.c.h.b16 %v183
    %v202 = vunpack.c.l.b16 %v184
    %v203 = vunpack.c.h.b16 %v184
    %v204 = vunpack.c.l.b16 %v185
    %v205 = vunpack.c.h.b16 %v185
    %v206 = vunpack.c.l.b16 %v186
    %v207 = vunpack.c.h.b16 %v186
    %v208 = vunpack.c.l.b16 %v187
    %v209 = vunpack.c.h.b16 %v187
    %v210 = vunpack.c.l.b16 %v188
    %v211 = vunpack.c.h.b16 %v188
    %v212 = vunpack.c.l.b16 %v189
    %v213 = vunpack.c.h.b16 %v189
    %v214 = vpack.c.b16 %v200, %v198
    %v215 = vpack.c.b16 %v201, %v199
    %v216 = vpack.c.b16 %v204, %v202
    %v217 = vpack.c.b16 %v205, %v203
    %v218 = vpack.c.b16 %v208, %v206
    %v219 = vpack.c.b16 %v209, %v207
    %v220 = vpack.c.b16 %v212, %v210
    %v221 = vpack.c.b16 %v213, %v211
    %vm230 = vcmask 523264
    %v232 = vsel %vm230, 0, 0
    %234 = vmatprep.subr.bf16.mxu0 %v215
    %235 = vmatpush1.bf16.msra.mxu0 %v214
    %236 = vmatprep.subr.bf16.mxu0 %v217
    %237 = vmatpush1.bf16.msra.mxu0 %v216
    %238 = vmatprep.subr.bf16.mxu0 %v219
    %239 = vmatpush1.bf16.msra.mxu0 %v218
    %240 = vmatprep.subr.bf16.mxu0 %v221
    %241 = vmatpush1.bf16.msra.mxu0 %v220
    %242 = vmatprep.subr.bf16.mxu0 0
    %243 = vmatpush1.bf16.msra.mxu0 0
    %244 = vmatprep.subr.bf16.mxu0 0
    %245 = vmatpush1.bf16.msra.mxu0 0
    %246 = vmatprep.subr.bf16.mxu0 0
    %247 = vmatpush1.bf16.msra.mxu0 0
    %248 = vmatprep.subr.bf16.mxu0 0
    %249 = vmatpush1.bf16.msra.mxu0 0
    %250 = vmatprep.subr.bf16.mxu0 0
    %251 = vmatpush1.bf16.msra.mxu0 0
    %252 = vmatprep.subr.bf16.mxu0 0
    %253 = vmatpush1.bf16.msra.mxu0 0
    %254 = vmatprep.subr.bf16.mxu0 0
    %255 = vmatpush1.bf16.msra.mxu0 0
    %256 = vmatprep.subr.bf16.mxu0 0
    %257 = vmatpush1.bf16.msra.mxu0 0
    %258 = vmatprep.subr.bf16.mxu0 0
    %259 = vmatpush1.bf16.msra.mxu0 0
    %260 = vmatprep.subr.bf16.mxu0 0
    %261 = vmatpush1.bf16.msra.mxu0 0
    %262 = vmatprep.subr.bf16.mxu0 0
    %263 = vmatpush1.bf16.msra.mxu0 0
    %264 = vmatprep.subr.bf16.mxu0 0
    %265 = vmatpush1.bf16.msra.mxu0 0
    %266 = vmatprep.mubr.bf16.mxu0 0
    %267 = vmatmul.mubr.bf16.gmra.mrb[0].mxu0 %v232
    %v268 = vpop.f32.mrb[0].mxu0
    %v269 = vadd.f32 0.0, %v268
    %v270 = vpop.f32.mrb[0].mxu0
    %v271 = vadd.f32 0.0, %v270
    %v272 = vpop.f32.mrb[0].mxu0
    %v273 = vpop.f32.mrb[0].mxu0
    %274 = vdwg.mxu0
    %v275 = vadd.f32 %v180, %v269
    %v276 = vadd.f32 %v181, %v271
    %v277 = vtanh.pop %v276
    %v278 = vxor.u32 %v275, 2147483648
    %v279 = vmul.f32 %v278, 1.442695
    %v280 = vpow.pop %v279
    %v281 = vadd.f32 %v280, 1.0
    %v282 = vrcp.pop %v281
    %v283 = vmul.f32 1.0, %v282
    %v284 = vxor.u32 %v276, 2147483648
    %v285 = vmul.f32 %v284, 1.442695
    %v286 = vpow.pop %v285
    %v287 = vadd.f32 %v286, 1.0
    %v288 = vrcp.pop %v287
    %v289 = vmul.f32 1.0, %v288
    %v290 = vmul.f32 %v283, 0.0
    %v291 = vmul.f32 %v283, %v277
    %293 = vrot.lane.b32.xlu0 %v291, 64
    %v294 = vpop.permute.xlu0 %293
    %v296 = vadd.f32 %v290, %v294
    %v297 = vtanh.pop %v296
    %v298 = vmul.f32 %v289, %v297
    %v299 = vld [vmem:[#allocation2] sm:$0xc]
    %v300 = vld [vmem:[#allocation2 + $0x8] sm:$0xc]
    %v301 = vpack.c.bf16 %v298, %v298
    %303 = vrot.lane.b32.xlu0 %v301, 64
    %v304 = vpop.permute.xlu0 %303
    %v306 = vsel %vm230, %v304, 0
    %308 = vmatprep.subr.bf16.mxu0 %v215
    %309 = vmatpush1.bf16.msra.mxu0 %v214
    %310 = vmatprep.subr.bf16.mxu0 %v217
    %311 = vmatpush1.bf16.msra.mxu0 %v216
    %312 = vmatprep.subr.bf16.mxu0 %v219
    %313 = vmatpush1.bf16.msra.mxu0 %v218
    %314 = vmatprep.subr.bf16.mxu0 %v221
    %315 = vmatpush1.bf16.msra.mxu0 %v220
    %316 = vmatprep.subr.bf16.mxu0 0
    %317 = vmatpush1.bf16.msra.mxu0 0
    %318 = vmatprep.subr.bf16.mxu0 0
    %319 = vmatpush1.bf16.msra.mxu0 0
    %320 = vmatprep.subr.bf16.mxu0 0
    %321 = vmatpush1.bf16.msra.mxu0 0
    %322 = vmatprep.subr.bf16.mxu0 0
    %323 = vmatpush1.bf16.msra.mxu0 0
    %324 = vmatprep.subr.bf16.mxu0 0
    %325 = vmatpush1.bf16.msra.mxu0 0
    %326 = vmatprep.subr.bf16.mxu0 0
    %327 = vmatpush1.bf16.msra.mxu0 0
    %328 = vmatprep.subr.bf16.mxu0 0
    %329 = vmatpush1.bf16.msra.mxu0 0
    %330 = vmatprep.subr.bf16.mxu0 0
    %331 = vmatpush1.bf16.msra.mxu0 0
    %332 = vmatprep.subr.bf16.mxu0 0
    %333 = vmatpush1.bf16.msra.mxu0 0
    %334 = vmatprep.subr.bf16.mxu0 0
    %335 = vmatpush1.bf16.msra.mxu0 0
    %336 = vmatprep.subr.bf16.mxu0 0
    %337 = vmatpush1.bf16.msra.mxu0 0
    %338 = vmatprep.subr.bf16.mxu0 0
    %339 = vmatpush1.bf16.msra.mxu0 0
    %340 = vmatprep.mubr.bf16.mxu0 0
    %341 = vmatmul.mubr.bf16.gmra.mrb[0].mxu0 %v306
    %v342 = vpop.f32.mrb[0].mxu0
    %v343 = vadd.f32 0.0, %v342
    %v344 = vpop.f32.mrb[0].mxu0
    %v345 = vadd.f32 0.0, %v344
    %v346 = vpop.f32.mrb[0].mxu0
    %v347 = vpop.f32.mrb[0].mxu0
    %348 = vdwg.mxu0
    %v351 = vrot.slane %v343, 6
    %v352 = vrot.slane %v345, 6
    %v355 = vadd.f32 %v299, %v351
    %v356 = vadd.f32 %v300, %v352
    %v357 = vtanh.pop %v356
    %v358 = vxor.u32 %v355, 2147483648
    %v359 = vmul.f32 %v358, 1.442695
    %v360 = vpow.pop %v359
    %v361 = vadd.f32 %v360, 1.0
    %v362 = vrcp.pop %v361
    %v363 = vmul.f32 1.0, %v362
    %v364 = vxor.u32 %v356, 2147483648
    %v365 = vmul.f32 %v364, 1.442695
    %v366 = vpow.pop %v365
    %v367 = vadd.f32 %v366, 1.0
    %v368 = vrcp.pop %v367
    %v369 = vmul.f32 1.0, %v368
    %v371 = vrot.slane %v296, 6
    %v373 = vmul.f32 %v363, %v371
    %v374 = vmul.f32 %v363, %v357
    %376 = vrot.lane.b32.xlu0 %v374, 64
    %v377 = vpop.permute.xlu0 %376
    %v379 = vadd.f32 %v373, %v377
    %v380 = vtanh.pop %v379
    %v381 = vmul.f32 %v369, %v380
    %v382 = vld [vmem:[#allocation2] sm:$0x30]
    %v383 = vld [vmem:[#allocation2 + $0x8] sm:$0x30]
    %v384 = vpack.c.bf16 %v381, %v381
    %v386 = vrot.slane %v384, 1
    %387 = vrot.lane.b32.xlu0 %v386, 64
    %v388 = vpop.permute.xlu0 %387
    %v390 = vsel %vm230, %v388, 0
    %392 = vmatprep.subr.bf16.mxu0 %v215
    %393 = vmatpush1.bf16.msra.mxu0 %v214
    %394 = vmatprep.subr.bf16.mxu0 %v217
    %395 = vmatpush1.bf16.msra.mxu0 %v216
    %396 = vmatprep.subr.bf16.mxu0 %v219
    %397 = vmatpush1.bf16.msra.mxu0 %v218
    %398 = vmatprep.subr.bf16.mxu0 %v221
    %399 = vmatpush1.bf16.msra.mxu0 %v220
    %400 = vmatprep.subr.bf16.mxu0 0
    %401 = vmatpush1.bf16.msra.mxu0 0
    %402 = vmatprep.subr.bf16.mxu0 0
    %403 = vmatpush1.bf16.msra.mxu0 0
    %404 = vmatprep.subr.bf16.mxu0 0
    %405 = vmatpush1.bf16.msra.mxu0 0
    %406 = vmatprep.subr.bf16.mxu0 0
    %407 = vmatpush1.bf16.msra.mxu0 0
    %408 = vmatprep.subr.bf16.mxu0 0
    %409 = vmatpush1.bf16.msra.mxu0 0
    %410 = vmatprep.subr.bf16.mxu0 0
    %411 = vmatpush1.bf16.msra.mxu0 0
    %412 = vmatprep.subr.bf16.mxu0 0
    %413 = vmatpush1.bf16.msra.mxu0 0
    %414 = vmatprep.subr.bf16.mxu0 0
    %415 = vmatpush1.bf16.msra.mxu0 0
    %416 = vmatprep.subr.bf16.mxu0 0
    %417 = vmatpush1.bf16.msra.mxu0 0
    %418 = vmatprep.subr.bf16.mxu0 0
    %419 = vmatpush1.bf16.msra.mxu0 0
    %420 = vmatprep.subr.bf16.mxu0 0
    %421 = vmatpush1.bf16.msra.mxu0 0
    %422 = vmatprep.subr.bf16.mxu0 0
    %423 = vmatpush1.bf16.msra.mxu0 0
    %424 = vmatprep.mubr.bf16.mxu0 0
    %425 = vmatmul.mubr.bf16.gmra.mrb[0].mxu0 %v390
    %v426 = vpop.f32.mrb[0].mxu0
    %v427 = vadd.f32 0.0, %v426
    %v428 = vpop.f32.mrb[0].mxu0
    %v429 = vadd.f32 0.0, %v428
    %v430 = vpop.f32.mrb[0].mxu0
    %v431 = vpop.f32.mrb[0].mxu0
    %432 = vdwg.mxu0
    %v435 = vrot.slane %v427, 4
    %v436 = vrot.slane %v429, 4
    %v439 = vadd.f32 %v382, %v435
    %v440 = vadd.f32 %v383, %v436
    %v441 = vtanh.pop %v440
    %v442 = vxor.u32 %v439, 2147483648
    %v443 = vmul.f32 %v442, 1.442695
    %v444 = vpow.pop %v443
    %v445 = vadd.f32 %v444, 1.0
    %v446 = vrcp.pop %v445
    %v447 = vmul.f32 1.0, %v446
    %v448 = vxor.u32 %v440, 2147483648
    %v449 = vmul.f32 %v448, 1.442695
    %v450 = vpow.pop %v449
    %v451 = vadd.f32 %v450, 1.0
    %v452 = vrcp.pop %v451
    %v453 = vmul.f32 1.0, %v452
    %v455 = vrot.slane %v379, 6
    %v457 = vmul.f32 %v447, %v455
    %v458 = vmul.f32 %v447, %v441
    %460 = vrot.lane.b32.xlu0 %v458, 64
    %v461 = vpop.permute.xlu0 %460
    %v463 = vadd.f32 %v457, %v461
    %v464 = vtanh.pop %v463
    %v465 = vmul.f32 %v453, %v464
    %v466 = vld [vmem:[#allocation2] sm:$0xc0]
    %v467 = vld [vmem:[#allocation2 + $0x8] sm:$0xc0]
    %v468 = vpack.c.bf16 %v465, %v465
    %v470 = vrot.slane %v468, 2
    %471 = vrot.lane.b32.xlu0 %v470, 64
    %v472 = vpop.permute.xlu0 %471
    %v474 = vsel %vm230, %v472, 0
    %476 = vmatprep.subr.bf16.mxu0 %v215
    %477 = vmatpush1.bf16.msra.mxu0 %v214
    %478 = vmatprep.subr.bf16.mxu0 %v217
    %479 = vmatpush1.bf16.msra.mxu0 %v216
    %480 = vmatprep.subr.bf16.mxu0 %v219
    %481 = vmatpush1.bf16.msra.mxu0 %v218
    %482 = vmatprep.subr.bf16.mxu0 %v221
    %483 = vmatpush1.bf16.msra.mxu0 %v220
    %484 = vmatprep.subr.bf16.mxu0 0
    %485 = vmatpush1.bf16.msra.mxu0 0
    %486 = vmatprep.subr.bf16.mxu0 0
    %487 = vmatpush1.bf16.msra.mxu0 0
    %488 = vmatprep.subr.bf16.mxu0 0
    %489 = vmatpush1.bf16.msra.mxu0 0
    %490 = vmatprep.subr.bf16.mxu0 0
    %491 = vmatpush1.bf16.msra.mxu0 0
    %492 = vmatprep.subr.bf16.mxu0 0
    %493 = vmatpush1.bf16.msra.mxu0 0
    %494 = vmatprep.subr.bf16.mxu0 0
    %495 = vmatpush1.bf16.msra.mxu0 0
    %496 = vmatprep.subr.bf16.mxu0 0
    %497 = vmatpush1.bf16.msra.mxu0 0
    %498 = vmatprep.subr.bf16.mxu0 0
    %499 = vmatpush1.bf16.msra.mxu0 0
    %500 = vmatprep.subr.bf16.mxu0 0
    %501 = vmatpush1.bf16.msra.mxu0 0
    %502 = vmatprep.subr.bf16.mxu0 0
    %503 = vmatpush1.bf16.msra.mxu0 0
    %504 = vmatprep.subr.bf16.mxu0 0
    %505 = vmatpush1.bf16.msra.mxu0 0
    %506 = vmatprep.subr.bf16.mxu0 0
    %507 = vmatpush1.bf16.msra.mxu0 0
    %508 = vmatprep.mubr.bf16.mxu0 0
    %509 = vmatmul.mubr.bf16.gmra.mrb[0].mxu0 %v474
    %v510 = vpop.f32.mrb[0].mxu0
    %v511 = vadd.f32 0.0, %v510
    %v512 = vpop.f32.mrb[0].mxu0
    %v513 = vadd.f32 0.0, %v512
    %v514 = vpop.f32.mrb[0].mxu0
    %v515 = vpop.f32.mrb[0].mxu0
    %516 = vdwg.mxu0
    %v519 = vrot.slane %v511, 2
    %v520 = vrot.slane %v513, 2
    %v523 = vadd.f32 %v466, %v519
    %v524 = vadd.f32 %v467, %v520
    %v525 = vtanh.pop %v524
    %v526 = vxor.u32 %v523, 2147483648
    %v527 = vmul.f32 %v526, 1.442695
    %v528 = vpow.pop %v527
    %v529 = vadd.f32 %v528, 1.0
    %v530 = vrcp.pop %v529
    %v531 = vmul.f32 1.0, %v530
    %v532 = vxor.u32 %v524, 2147483648
    %v533 = vmul.f32 %v532, 1.442695
    %v534 = vpow.pop %v533
    %v535 = vadd.f32 %v534, 1.0
    %v536 = vrcp.pop %v535
    %v537 = vmul.f32 1.0, %v536
    %v539 = vrot.slane %v463, 6
    %v541 = vmul.f32 %v531, %v539
    %v542 = vmul.f32 %v531, %v525
    %544 = vrot.lane.b32.xlu0 %v542, 64
    %v545 = vpop.permute.xlu0 %544
    %v547 = vadd.f32 %v541, %v545
    %v548 = vtanh.pop %v547
    %v549 = vmul.f32 %v537, %v548
    %v550 = vld [vmem:[#allocation2 + $0x10] sm:$0x3]
    %v551 = vld [vmem:[#allocation2 + $0x18] sm:$0x3]
    %v552 = vpack.c.bf16 %v549, %v549
    %v554 = vrot.slane %v552, 3
    %555 = vrot.lane.b32.xlu0 %v554, 64
    %v556 = vpop.permute.xlu0 %555
    %v558 = vsel %vm230, %v556, 0
    %560 = vmatprep.subr.bf16.mxu0 %v215
    %561 = vmatpush1.bf16.msra.mxu0 %v214
    %562 = vmatprep.subr.bf16.mxu0 %v217
    %563 = vmatpush1.bf16.msra.mxu0 %v216
    %564 = vmatprep.subr.bf16.mxu0 %v219
    %565 = vmatpush1.bf16.msra.mxu0 %v218
    %566 = vmatprep.subr.bf16.mxu0 %v221
    %567 = vmatpush1.bf16.msra.mxu0 %v220
    %568 = vmatprep.subr.bf16.mxu0 0
    %569 = vmatpush1.bf16.msra.mxu0 0
    %570 = vmatprep.subr.bf16.mxu0 0
    %571 = vmatpush1.bf16.msra.mxu0 0
    %572 = vmatprep.subr.bf16.mxu0 0
    %573 = vmatpush1.bf16.msra.mxu0 0
    %574 = vmatprep.subr.bf16.mxu0 0
    %575 = vmatpush1.bf16.msra.mxu0 0
    %576 = vmatprep.subr.bf16.mxu0 0
    %577 = vmatpush1.bf16.msra.mxu0 0
    %578 = vmatprep.subr.bf16.mxu0 0
    %579 = vmatpush1.bf16.msra.mxu0 0
    %580 = vmatprep.subr.bf16.mxu0 0
    %581 = vmatpush1.bf16.msra.mxu0 0
    %582 = vmatprep.subr.bf16.mxu0 0
    %583 = vmatpush1.bf16.msra.mxu0 0
    %584 = vmatprep.subr.bf16.mxu0 0
    %585 = vmatpush1.bf16.msra.mxu0 0
    %586 = vmatprep.subr.bf16.mxu0 0
    %587 = vmatpush1.bf16.msra.mxu0 0
    %588 = vmatprep.subr.bf16.mxu0 0
    %589 = vmatpush1.bf16.msra.mxu0 0
    %590 = vmatprep.subr.bf16.mxu0 0
    %591 = vmatpush1.bf16.msra.mxu0 0
    %592 = vmatprep.mubr.bf16.mxu0 0
    %593 = vmatmul.mubr.bf16.gmra.mrb[0].mxu0 %v558
    %v594 = vpop.f32.mrb[0].mxu0
    %v595 = vadd.f32 0.0, %v594
    %v596 = vpop.f32.mrb[0].mxu0
    %v597 = vadd.f32 0.0, %v596
    %v598 = vpop.f32.mrb[0].mxu0
    %v599 = vpop.f32.mrb[0].mxu0
    %600 = vdwg.mxu0
    %v601 = vadd.f32 %v550, %v595
    %v602 = vadd.f32 %v551, %v597
    %v603 = vtanh.pop %v602
    %v604 = vxor.u32 %v601, 2147483648
    %v605 = vmul.f32 %v604, 1.442695
    %v606 = vpow.pop %v605
    %v607 = vadd.f32 %v606, 1.0
    %v608 = vrcp.pop %v607
    %v609 = vmul.f32 1.0, %v608
    %v610 = vxor.u32 %v602, 2147483648
    %v611 = vmul.f32 %v610, 1.442695
    %v612 = vpow.pop %v611
    %v613 = vadd.f32 %v612, 1.0
    %v614 = vrcp.pop %v613
    %v615 = vmul.f32 1.0, %v614
    %v617 = vrot.slane %v547, 6
    %v619 = vmul.f32 %v609, %v617
    %v620 = vmul.f32 %v609, %v603
    %622 = vrot.lane.b32.xlu0 %v620, 64
    %v623 = vpop.permute.xlu0 %622
    %v625 = vadd.f32 %v619, %v623
    %v626 = vtanh.pop %v625
    %v627 = vmul.f32 %v615, %v626
    %v628 = vld [vmem:[#allocation2 + $0x10] sm:$0xc]
    %v629 = vld [vmem:[#allocation2 + $0x18] sm:$0xc]
    %v630 = vpack.c.bf16 %v627, %v627
    %632 = vrot.lane.b32.xlu0 %v630, 64
    %v633 = vpop.permute.xlu0 %632
    %v635 = vsel %vm230, %v633, 0
    %637 = vmatprep.subr.bf16.mxu0 %v215
    %638 = vmatpush1.bf16.msra.mxu0 %v214
    %639 = vmatprep.subr.bf16.mxu0 %v217
    %640 = vmatpush1.bf16.msra.mxu0 %v216
    %641 = vmatprep.subr.bf16.mxu0 %v219
    %642 = vmatpush1.bf16.msra.mxu0 %v218
    %643 = vmatprep.subr.bf16.mxu0 %v221
    %644 = vmatpush1.bf16.msra.mxu0 %v220
    %645 = vmatprep.subr.bf16.mxu0 0
    %646 = vmatpush1.bf16.msra.mxu0 0
    %647 = vmatprep.subr.bf16.mxu0 0
    %648 = vmatpush1.bf16.msra.mxu0 0
    %649 = vmatprep.subr.bf16.mxu0 0
    %650 = vmatpush1.bf16.msra.mxu0 0
    %651 = vmatprep.subr.bf16.mxu0 0
    %652 = vmatpush1.bf16.msra.mxu0 0
    %653 = vmatprep.subr.bf16.mxu0 0
    %654 = vmatpush1.bf16.msra.mxu0 0
    %655 = vmatprep.subr.bf16.mxu0 0
    %656 = vmatpush1.bf16.msra.mxu0 0
    %657 = vmatprep.subr.bf16.mxu0 0
    %658 = vmatpush1.bf16.msra.mxu0 0
    %659 = vmatprep.subr.bf16.mxu0 0
    %660 = vmatpush1.bf16.msra.mxu0 0
    %661 = vmatprep.subr.bf16.mxu0 0
    %662 = vmatpush1.bf16.msra.mxu0 0
    %663 = vmatprep.subr.bf16.mxu0 0
    %664 = vmatpush1.bf16.msra.mxu0 0
    %665 = vmatprep.subr.bf16.mxu0 0
    %666 = vmatpush1.bf16.msra.mxu0 0
    %667 = vmatprep.subr.bf16.mxu0 0
    %668 = vmatpush1.bf16.msra.mxu0 0
    %669 = vmatprep.mubr.bf16.mxu0 0
    %670 = vmatmul.mubr.bf16.gmra.mrb[0].mxu0 %v635
    %v671 = vpop.f32.mrb[0].mxu0
    %v672 = vadd.f32 0.0, %v671
    %v673 = vpop.f32.mrb[0].mxu0
    %v674 = vadd.f32 0.0, %v673
    %v675 = vpop.f32.mrb[0].mxu0
    %v676 = vpop.f32.mrb[0].mxu0
    %677 = vdwg.mxu0
    %v680 = vrot.slane %v672, 6
    %v681 = vrot.slane %v674, 6
    %v684 = vadd.f32 %v628, %v680
    %v685 = vadd.f32 %v629, %v681
    %v686 = vtanh.pop %v685
    %v687 = vxor.u32 %v684, 2147483648
    %v688 = vmul.f32 %v687, 1.442695
    %v689 = vpow.pop %v688
    %v690 = vadd.f32 %v689, 1.0
    %v691 = vrcp.pop %v690
    %v692 = vmul.f32 1.0, %v691
    %v693 = vxor.u32 %v685, 2147483648
    %v694 = vmul.f32 %v693, 1.442695
    %v695 = vpow.pop %v694
    %v696 = vadd.f32 %v695, 1.0
    %v697 = vrcp.pop %v696
    %v698 = vmul.f32 1.0, %v697
    %v700 = vrot.slane %v625, 6
    %v702 = vmul.f32 %v692, %v700
    %v703 = vmul.f32 %v692, %v686
    %705 = vrot.lane.b32.xlu0 %v703, 64
    %v706 = vpop.permute.xlu0 %705
    %v708 = vadd.f32 %v702, %v706
    %v709 = vtanh.pop %v708
    %v710 = vmul.f32 %v698, %v709
    %v711 = vld [vmem:[#allocation2 + $0x10] sm:$0x30]
    %v712 = vld [vmem:[#allocation2 + $0x18] sm:$0x30]
    %v713 = vpack.c.bf16 %v710, %v710
    %v715 = vrot.slane %v713, 1
    %716 = vrot.lane.b32.xlu0 %v715, 64
    %v717 = vpop.permute.xlu0 %716
    %v719 = vsel %vm230, %v717, 0
    %721 = vmatprep.subr.bf16.mxu0 %v215
    %722 = vmatpush1.bf16.msra.mxu0 %v214
    %723 = vmatprep.subr.bf16.mxu0 %v217
    %724 = vmatpush1.bf16.msra.mxu0 %v216
    %725 = vmatprep.subr.bf16.mxu0 %v219
    %726 = vmatpush1.bf16.msra.mxu0 %v218
    %727 = vmatprep.subr.bf16.mxu0 %v221
    %728 = vmatpush1.bf16.msra.mxu0 %v220
    %729 = vmatprep.subr.bf16.mxu0 0
    %730 = vmatpush1.bf16.msra.mxu0 0
    %731 = vmatprep.subr.bf16.mxu0 0
    %732 = vmatpush1.bf16.msra.mxu0 0
    %733 = vmatprep.subr.bf16.mxu0 0
    %734 = vmatpush1.bf16.msra.mxu0 0
    %735 = vmatprep.subr.bf16.mxu0 0
    %736 = vmatpush1.bf16.msra.mxu0 0
    %737 = vmatprep.subr.bf16.mxu0 0
    %738 = vmatpush1.bf16.msra.mxu0 0
    %739 = vmatprep.subr.bf16.mxu0 0
    %740 = vmatpush1.bf16.msra.mxu0 0
    %741 = vmatprep.subr.bf16.mxu0 0
    %742 = vmatpush1.bf16.msra.mxu0 0
    %743 = vmatprep.subr.bf16.mxu0 0
    %744 = vmatpush1.bf16.msra.mxu0 0
    %745 = vmatprep.subr.bf16.mxu0 0
    %746 = vmatpush1.bf16.msra.mxu0 0
    %747 = vmatprep.subr.bf16.mxu0 0
    %748 = vmatpush1.bf16.msra.mxu0 0
    %749 = vmatprep.subr.bf16.mxu0 0
    %750 = vmatpush1.bf16.msra.mxu0 0
    %751 = vmatprep.subr.bf16.mxu0 0
    %752 = vmatpush1.bf16.msra.mxu0 0
    %753 = vmatprep.mubr.bf16.mxu0 0
    %754 = vmatmul.mubr.bf16.gmra.mrb[0].mxu0 %v719
    %v755 = vpop.f32.mrb[0].mxu0
    %v756 = vadd.f32 0.0, %v755
    %v757 = vpop.f32.mrb[0].mxu0
    %v758 = vadd.f32 0.0, %v757
    %v759 = vpop.f32.mrb[0].mxu0
    %v760 = vpop.f32.mrb[0].mxu0
    %761 = vdwg.mxu0
    %v764 = vrot.slane %v756, 4
    %v765 = vrot.slane %v758, 4
    %v768 = vadd.f32 %v711, %v764
    %v769 = vadd.f32 %v712, %v765
    %v770 = vtanh.pop %v769
    %v771 = vxor.u32 %v768, 2147483648
    %v772 = vmul.f32 %v771, 1.442695
    %v773 = vpow.pop %v772
    %v774 = vadd.f32 %v773, 1.0
    %v775 = vrcp.pop %v774
    %v776 = vmul.f32 1.0, %v775
    %v777 = vxor.u32 %v769, 2147483648
    %v778 = vmul.f32 %v777, 1.442695
    %v779 = vpow.pop %v778
    %v780 = vadd.f32 %v779, 1.0
    %v781 = vrcp.pop %v780
    %v782 = vmul.f32 1.0, %v781
    %v784 = vrot.slane %v708, 6
    %v786 = vmul.f32 %v776, %v784
    %v787 = vmul.f32 %v776, %v770
    %789 = vrot.lane.b32.xlu0 %v787, 64
    %v790 = vpop.permute.xlu0 %789
    %v792 = vadd.f32 %v786, %v790
    %v793 = vtanh.pop %v792
    %v794 = vmul.f32 %v782, %v793
    %v795 = vld [vmem:[#allocation2 + $0x10] sm:$0xc0]
    %v796 = vld [vmem:[#allocation2 + $0x18] sm:$0xc0]
    %v797 = vpack.c.bf16 %v794, %v794
    %v799 = vrot.slane %v797, 2
    %800 = vrot.lane.b32.xlu0 %v799, 64
    %v801 = vpop.permute.xlu0 %800
    %v803 = vsel %vm230, %v801, 0
    %805 = vmatprep.subr.bf16.mxu0 %v215
    %806 = vmatpush1.bf16.msra.mxu0 %v214
    %807 = vmatprep.subr.bf16.mxu0 %v217
    %808 = vmatpush1.bf16.msra.mxu0 %v216
    %809 = vmatprep.subr.bf16.mxu0 %v219
    %810 = vmatpush1.bf16.msra.mxu0 %v218
    %811 = vmatprep.subr.bf16.mxu0 %v221
    %812 = vmatpush1.bf16.msra.mxu0 %v220
    %813 = vmatprep.subr.bf16.mxu0 0
    %814 = vmatpush1.bf16.msra.mxu0 0
    %815 = vmatprep.subr.bf16.mxu0 0
    %816 = vmatpush1.bf16.msra.mxu0 0
    %817 = vmatprep.subr.bf16.mxu0 0
    %818 = vmatpush1.bf16.msra.mxu0 0
    %819 = vmatprep.subr.bf16.mxu0 0
    %820 = vmatpush1.bf16.msra.mxu0 0
    %821 = vmatprep.subr.bf16.mxu0 0
    %822 = vmatpush1.bf16.msra.mxu0 0
    %823 = vmatprep.subr.bf16.mxu0 0
    %824 = vmatpush1.bf16.msra.mxu0 0
    %825 = vmatprep.subr.bf16.mxu0 0
    %826 = vmatpush1.bf16.msra.mxu0 0
    %827 = vmatprep.subr.bf16.mxu0 0
    %828 = vmatpush1.bf16.msra.mxu0 0
    %829 = vmatprep.subr.bf16.mxu0 0
    %830 = vmatpush1.bf16.msra.mxu0 0
    %831 = vmatprep.subr.bf16.mxu0 0
    %832 = vmatpush1.bf16.msra.mxu0 0
    %833 = vmatprep.subr.bf16.mxu0 0
    %834 = vmatpush1.bf16.msra.mxu0 0
    %835 = vmatprep.subr.bf16.mxu0 0
    %836 = vmatpush1.bf16.msra.mxu0 0
    %837 = vmatprep.mubr.bf16.mxu0 0
    %838 = vmatmul.mubr.bf16.gmra.mrb[0].mxu0 %v803
    %v839 = vpop.f32.mrb[0].mxu0
    %v840 = vadd.f32 0.0, %v839
    %v841 = vpop.f32.mrb[0].mxu0
    %v842 = vadd.f32 0.0, %v841
    %v843 = vpop.f32.mrb[0].mxu0
    %v844 = vpop.f32.mrb[0].mxu0
    %845 = vdwg.mxu0
    %v848 = vrot.slane %v840, 2
    %v849 = vrot.slane %v842, 2
    %v852 = vadd.f32 %v795, %v848
    %v853 = vadd.f32 %v796, %v849
    %v854 = vtanh.pop %v853
    %v855 = vxor.u32 %v852, 2147483648
    %v856 = vmul.f32 %v855, 1.442695
    %v857 = vpow.pop %v856
    %v858 = vadd.f32 %v857, 1.0
    %v859 = vrcp.pop %v858
    %v860 = vmul.f32 1.0, %v859
    %v861 = vxor.u32 %v853, 2147483648
    %v862 = vmul.f32 %v861, 1.442695
    %v863 = vpow.pop %v862
    %v864 = vadd.f32 %v863, 1.0
    %v865 = vrcp.pop %v864
    %v866 = vmul.f32 1.0, %v865
    %v868 = vrot.slane %v792, 6
    %v870 = vmul.f32 %v860, %v868
    %v871 = vmul.f32 %v860, %v854
    %873 = vrot.lane.b32.xlu0 %v871, 64
    %v874 = vpop.permute.xlu0 %873
    %v876 = vadd.f32 %v870, %v874
    %v877 = vtanh.pop %v876
    %v878 = vmul.f32 %v866, %v877
    %v879 = vpack.c.bf16 %v878, %v878
    %v880 = vld [vmem:[#allocation6] sm:$0xf]
    %v881 = vld [vmem:[#allocation6 + $0x4] sm:$0xf]
    %v882 = vld [vmem:[#allocation6 + $0x8] sm:$0xf]
    %v883 = vld [vmem:[#allocation6 + $0xc] sm:$0xf]
    %v884 = vld [vmem:[#allocation6 + $0x10] sm:$0xf]
    %v885 = vld [vmem:[#allocation6 + $0x14] sm:$0xf]
    %v886 = vld [vmem:[#allocation6 + $0x18] sm:$0xf]
    %v887 = vld [vmem:[#allocation6 + $0x1c] sm:$0xf]
    %v888 = vld [vmem:[%s5] sm:$0x1]
    %v890 = vlaneseq
    %v891 = vshrl.u32 %v890, 7
    %v892 = vsub.s32 0, %v891
    %v893 = vrot.slane %v888, %v892
    %v896 = vrot.slane %v879, 3
    %897 = vrot.lane.b32.xlu0 %v896, 64
    %v898 = vpop.permute.xlu0 %897
    %v907 = vunpack.c.l.b16 %v880
    %v908 = vunpack.c.l.b16 %v881
    %v909 = vunpack.c.l.b16 %v882
    %v910 = vunpack.c.l.b16 %v883
    %v911 = vunpack.c.l.b16 %v884
    %v912 = vunpack.c.l.b16 %v885
    %v913 = vunpack.c.l.b16 %v886
    %v914 = vunpack.c.l.b16 %v887
    %v915 = vpack.c.b16 %v908, %v907
    %v916 = vpack.c.b16 %v910, %v909
    %v917 = vpack.c.b16 %v912, %v911
    %v918 = vpack.c.b16 %v914, %v913
    %v924 = vsel %vm230, %v898, 0
    %926 = vmatprep.subr.bf16.mxu0 0
    %927 = vmatpush1.bf16.msra.mxu0 %v915
    %928 = vmatprep.subr.bf16.mxu0 0
    %929 = vmatpush1.bf16.msra.mxu0 %v916
    %930 = vmatprep.subr.bf16.mxu0 0
    %931 = vmatpush1.bf16.msra.mxu0 %v917
    %932 = vmatprep.subr.bf16.mxu0 0
    %933 = vmatpush1.bf16.msra.mxu0 %v918
    %934 = vmatprep.subr.bf16.mxu0 0
    %935 = vmatpush1.bf16.msra.mxu0 0
    %936 = vmatprep.subr.bf16.mxu0 0
    %937 = vmatpush1.bf16.msra.mxu0 0
    %938 = vmatprep.subr.bf16.mxu0 0
    %939 = vmatpush1.bf16.msra.mxu0 0
    %940 = vmatprep.subr.bf16.mxu0 0
    %941 = vmatpush1.bf16.msra.mxu0 0
    %942 = vmatprep.subr.bf16.mxu0 0
    %943 = vmatpush1.bf16.msra.mxu0 0
    %944 = vmatprep.subr.bf16.mxu0 0
    %945 = vmatpush1.bf16.msra.mxu0 0
    %946 = vmatprep.subr.bf16.mxu0 0
    %947 = vmatpush1.bf16.msra.mxu0 0
    %948 = vmatprep.subr.bf16.mxu0 0
    %949 = vmatpush1.bf16.msra.mxu0 0
    %950 = vmatprep.subr.bf16.mxu0 0
    %951 = vmatpush1.bf16.msra.mxu0 0
    %952 = vmatprep.subr.bf16.mxu0 0
    %953 = vmatpush1.bf16.msra.mxu0 0
    %954 = vmatprep.subr.bf16.mxu0 0
    %955 = vmatpush1.bf16.msra.mxu0 0
    %956 = vmatprep.subr.bf16.mxu0 0
    %957 = vmatpush1.bf16.msra.mxu0 0
    %958 = vmatprep.mubr.bf16.mxu0 0
    %959 = vmatmul.mubr.bf16.gmra.mrb[0].mxu0 %v924
    %v960 = vpop.f32.mrb[0].mxu0
    %v961 = vadd.f32 %v893, %v960
    %v962 = vpop.f32.mrb[0].mxu0
    %v963 = vpop.f32.mrb[0].mxu0
    %v964 = vpop.f32.mrb[0].mxu0
    %965 = vdwg.mxu0
    %vm966 = vcmask 9216
    %967 = vst.msk [vmem:[#allocation8] sm:$0x3] %vm966, %v961
    // Predicated region
    $region34: #{lstm_model_forward.1} parent=1 // pred_check
      _
    $region35: #{lstm_model_forward.1} parent=1 // pred_check_branch
      %969 = sbr.rel (0) target = $region37
    $region36: #{lstm_model_forward.1} parent=1 // pred_region
      %s971 = ssub.s32 32, 32
      %972 = vsyncadd [#allocation5], %s971
      %s974 = sshll.u32 [#allocation8], 4
      %s975 = int_to_ptr.vmem [resolvable:$true] %s974
      %977 = dma.vmem_to_hbm [thread:$0]  %s975, 32, %s6, [#allocation5]
    $region37: #{lstm_model_forward.1} parent=1 // pred_fallthru
      _
    // Predicated region
    $region38: #{lstm_model_forward.1} parent=1 // pred_check
      _
    $region39: #{lstm_model_forward.1} parent=1 // pred_check_branch
      %979 = sbr.rel (0) target = $region41
    $region40: #{lstm_model_forward.1} parent=1 // pred_region
      %980 = dma.done [#allocation5], 32
    $region41: #{lstm_model_forward.1} parent=1 // pred_fallthru
      _
    %981 = vsyncpa [#allocation4], 1
    %982 = vsyncpa [#allocation7], 1
    %983 = vsyncpa [#allocation5], 1

</llo_original>
